<compile_context>
chip_gen: v5e
topology: v5e:2x2
jax: 0.10.0
libtpu: 0.0.40
codegen_flags: <defaults>
</compile_context>

<pallas_src>
import math
import jax
import jax.numpy as jnp
from jax import lax
from jax.experimental import pallas as pl
from jax.experimental.pallas import tpu as pltpu

# Small synthetic config
B, S, H = 2, 8, 32          # batch, seq, hidden_size
NH, HD = 2, 16              # num_attention_heads, attention_head_size (NH*HD == H)
I = 64                      # intermediate_size
EPS = 1e-12                 # BertLayerNorm eps
T = B * S                   # total tokens
G = B * NH                  # attention groups: one per (batch, head)

# Row layout of the packed bias/gamma/beta slab (one [8,128] VMEM tile, one DMA)
_ROW_BQKV, _ROW_BAO, _ROW_G1, _ROW_B1, _ROW_BI, _ROW_BO, _ROW_G2, _ROW_B2 = range(8)


def _layernorm(x, g, b):
    mu = jnp.mean(x, axis=-1, keepdims=True)
    var = jnp.mean((x - mu) ** 2, axis=-1, keepdims=True)
    return (x - mu) * lax.rsqrt(var + EPS) * g + b


def _gelu(x):
    # exact erf-based gelu, matching the reference `gelu`
    return x * 0.5 * (1.0 + lax.erf(x / math.sqrt(2.0)))


def bert_layer_kernel(x_ref, maskg_ref, wqkv_ref, wao_ref, wi_ref, wo_ref, vec_ref,
                      out_ref):
    x = x_ref[...]                                       # [T, H]  all tokens at once
    vecs = vec_ref[...]                                  # [8, 128] packed bias/gamma/beta slab

    bqkv = vecs[_ROW_BQKV:_ROW_BQKV + 1, 0:3 * H]        # [1, 3H]
    bao  = vecs[_ROW_BAO:_ROW_BAO + 1, 0:H]
    g1   = vecs[_ROW_G1:_ROW_G1 + 1, 0:H]
    b1   = vecs[_ROW_B1:_ROW_B1 + 1, 0:H]
    bi   = vecs[_ROW_BI:_ROW_BI + 1, 0:I]
    bo   = vecs[_ROW_BO:_ROW_BO + 1, 0:H]
    g2   = vecs[_ROW_G2:_ROW_G2 + 1, 0:H]
    b2   = vecs[_ROW_B2:_ROW_B2 + 1, 0:H]

    # --- BertAttention: fused QKV projection (ONE MXU matmul, K=H, N=3H) ---
    qkv = jnp.dot(x, wqkv_ref[...], preferred_element_type=jnp.float32) + bqkv   # [T, 3H]
    q = qkv[:, 0 * H:1 * H]                              # head-major columns (n*HD + d)
    k = qkv[:, 1 * H:2 * H]
    v = qkv[:, 2 * H:3 * H]

    # One-time activation regrouping [T, NH*HD] -> [G, S, HD]; only static lane slices and
    # leading-dim reshapes/concats (no weight replication, no broadcast_to materialization).
    def to_groups(t):
        heads = [t[:, n * HD:(n + 1) * HD].reshape(B, 1, S, HD) for n in range(NH)]
        return jnp.concatenate(heads, axis=1).reshape(G, S, HD)

    qg, kg, vg = to_groups(q), to_groups(k), to_groups(v)

    # Scaled dot-product attention, batched over groups g = (batch, head).
    scores = jnp.einsum('gqd,gkd->gqk', qg, kg,
                        preferred_element_type=jnp.float32) * (1.0 / math.sqrt(HD))
    scores = scores + maskg_ref[...]                     # additive mask [G, 1, S]
    scores = scores - jnp.max(scores, axis=-1, keepdims=True)
    p = jnp.exp(scores)
    p = p * pl.reciprocal(jnp.sum(p, axis=-1, keepdims=True), approx=True)   # EUP recip
    ctx = jnp.einsum('gqk,gkd->gqd', p, vg, preferred_element_type=jnp.float32)  # [G, S, HD]

    # --- BertAttOutput: regroup ctx -> [T, H] (head-major columns == Wao row order),
    #     then ONE output projection contracting over full H, residual + LayerNorm ---
    ctx_b = ctx.reshape(B, NH, S, HD)
    ctx2 = jnp.concatenate([ctx_b[:, n].reshape(T, HD) for n in range(NH)], axis=-1)  # [T, H]
    att_dense = jnp.dot(ctx2, wao_ref[...], preferred_element_type=jnp.float32) + bao
    att = _layernorm(att_dense + x, g1, b1)              # [T, H]

    # --- BertIntermediate: dense + gelu ---
    inter = _gelu(jnp.dot(att, wi_ref[...], preferred_element_type=jnp.float32) + bi)

    # --- BertOutput: dense + residual + LayerNorm ---
    out = jnp.dot(inter, wo_ref[...], preferred_element_type=jnp.float32) + bo
    out_ref[...] = _layernorm(out + att, g2, b2)


def pack_params(p):
    """One-time, wrapper-side weight packing (hoisted out of the per-call path).

    Returns dict with:
      wqkv: [H, 3H]  columns [Wq | Wk | Wv]  (each block already head-major by construction)
      wao:  [H, H]   as-is (rows head-major by construction)
      wi:   [H, I], wo: [I, H]
      vecs: [8, 128] slab holding bqkv / bao / g1 / b1 / bi / bo / g2 / b2 rows
    """
    wqkv = jnp.concatenate([p["wq"], p["wk"], p["wv"]], axis=1)          # [H, 3H]
    bqkv = jnp.concatenate([p["bq"], p["bk"], p["bv"]], axis=1)          # [1, 3H]
    vecs = jnp.zeros((8, 128), jnp.float32)
    vecs = vecs.at[_ROW_BQKV, 0:3 * H].set(bqkv[0])
    vecs = vecs.at[_ROW_BAO, 0:H].set(p["bao"][0])
    vecs = vecs.at[_ROW_G1, 0:H].set(p["g1"][0])
    vecs = vecs.at[_ROW_B1, 0:H].set(p["b1"][0])
    vecs = vecs.at[_ROW_BI, 0:I].set(p["bi"][0])
    vecs = vecs.at[_ROW_BO, 0:H].set(p["bo"][0])
    vecs = vecs.at[_ROW_G2, 0:H].set(p["g2"][0])
    vecs = vecs.at[_ROW_B2, 0:H].set(p["b2"][0])
    return {"wqkv": wqkv, "wao": p["wao"], "wi": p["wi"], "wo": p["wo"], "vecs": vecs}


@jax.jit
def bert_layer(x, mask, packed):
    """x: [B, S, H] f32; mask: [B, 1, 1, S] additive mask; packed: output of pack_params."""
    x2 = x.reshape(T, H)                                                  # all tokens, one slab
    mask_g = jnp.broadcast_to(mask.reshape(B, 1, 1, S).astype(jnp.float32),
                              (B, NH, 1, S)).reshape(G, 1, S)             # tiny; fused under jit

    args = (x2, mask_g, packed["wqkv"], packed["wao"], packed["wi"], packed["wo"],
            packed["vecs"])

    flops = (2 * T * H * 3 * H            # fused QKV projection
             + 2 * G * S * S * HD * 2     # scores + context matmuls
             + 2 * T * H * H              # attention output projection
             + 2 * T * H * I * 2)         # FFN
    transcendentals = G * S * S + T * I + G * S      # exp + erf + recip
    bytes_accessed = sum(int(a.size) * 4 for a in args) + T * H * 4

    out2 = pl.pallas_call(
        bert_layer_kernel,
        out_shape=jax.ShapeDtypeStruct((T, H), jnp.float32),
        # Single invocation (no grid): at T=16 tokens everything is VMEM-resident and grid
        # per-step overhead would dominate.  See TODO(synk) at top for real-size tiling.
        in_specs=[pl.BlockSpec(memory_space=pltpu.MemorySpace.VMEM) for _ in args],
        out_specs=pl.BlockSpec(memory_space=pltpu.MemorySpace.VMEM),
        cost_estimate=pl.CostEstimate(flops=flops, transcendentals=transcendentals,
                                      bytes_accessed=bytes_accessed),
    )(*args)
    return out2.reshape(B, S, H)


def _reference(x, mask, p):
    # pure-JAX reference of the same forward pass (for correctness check)
    def ln(v, g, b):
        mu = jnp.mean(v, -1, keepdims=True)
        var = jnp.mean((v - mu) ** 2, -1, keepdims=True)
        return (v - mu) / jnp.sqrt(var + EPS) * g + b

    q = x @ p["wq"] + p["bq"]
    k = x @ p["wk"] + p["bk"]
    v = x @ p["wv"] + p["bv"]

    def split(t):  # [B,S,H] -> [B,NH,S,HD]
        return t.reshape(B, S, NH, HD).transpose(0, 2, 1, 3)

    qh, kh, vh = split(q), split(k), split(v)
    scores = jnp.einsum("bhqd,bhkd->bhqk", qh, kh) / math.sqrt(HD) + mask  # mask [B,1,1,S]
    probs = jax.nn.softmax(scores, axis=-1)
    ctx = jnp.einsum("bhqk,bhkd->bhqd", probs, vh).transpose(0, 2, 1, 3).reshape(B, S, H)
    att = ln(ctx @ p["wao"] + p["bao"] + x, p["g1"], p["b1"])
    inter = att @ p["wi"] + p["bi"]
    inter = inter * 0.5 * (1.0 + lax.erf(inter / math.sqrt(2.0)))
    out = ln(inter @ p["wo"] + p["bo"] + att, p["g2"], p["b2"])
    return out


def make_params(key):
    ks = jax.random.split(key, 10)
    std = 0.02
    return {
        "wq": jax.random.normal(ks[0], (H, H), jnp.float32) * std,
        "bq": jnp.zeros((1, H), jnp.float32),
        "wk": jax.random.normal(ks[1], (H, H), jnp.float32) * std,
        "bk": jnp.zeros((1, H), jnp.float32),
        "wv": jax.random.normal(ks[2], (H, H), jnp.float32) * std,
        "bv": jnp.zeros((1, H), jnp.float32),
        "wao": jax.random.normal(ks[3], (H, H), jnp.float32) * std,
        "bao": jax.random.normal(ks[4], (1, H), jnp.float32) * std,
        "g1": jnp.ones((1, H), jnp.float32),
        "b1": jnp.zeros((1, H), jnp.float32),
        "wi": jax.random.normal(ks[5], (H, I), jnp.float32) * std,
        "bi": jax.random.normal(ks[6], (1, I), jnp.float32) * std,
        "wo": jax.random.normal(ks[7], (I, H), jnp.float32) * std,
        "bo": jax.random.normal(ks[8], (1, H), jnp.float32) * std,
        "g2": jnp.ones((1, H), jnp.float32),
        "b2": jnp.zeros((1, H), jnp.float32),
    }


if __name__ == "__main__":
    key = jax.random.PRNGKey(0)
    kx, km, kp = jax.random.split(key, 3)

    x = jax.random.normal(kx, (B, S, H), jnp.float32)
    # additive attention mask: 0 for valid, -10000 for masked (standard BERT convention)
    valid = (jax.random.uniform(km, (B, 1, 1, S)) > 0.2).astype(jnp.float32)
    mask = (1.0 - valid) * -10000.0

    params = make_params(kp)
    packed = jax.tree_util.tree_map(jax.block_until_ready, pack_params(params))  # pack once

    out = bert_layer(x, mask, packed)
    out = jax.block_until_ready(out)

    ref = _reference(x, mask, params)
    assert out.shape == (B, S, H)
    assert jnp.allclose(out, ref, atol=1e-4, rtol=1e-4), (
        "max err %g" % float(jnp.max(jnp.abs(out - ref))))

    print("KERNEL_OK")
</pallas_src>

<mosaic_0001>
module attributes {stable_mosaic.version = 11 : i64} {
  func.func @bert_layer_kernel(%arg0: memref<16x32xf32, #tpu.memory_space<vmem>>, %arg1: memref<4x1x8xf32, #tpu.memory_space<vmem>>, %arg2: memref<32x96xf32, #tpu.memory_space<vmem>>, %arg3: memref<32x32xf32, #tpu.memory_space<vmem>>, %arg4: memref<32x64xf32, #tpu.memory_space<vmem>>, %arg5: memref<64x32xf32, #tpu.memory_space<vmem>>, %arg6: memref<8x128xf32, #tpu.memory_space<vmem>>, %arg7: memref<16x32xf32, #tpu.memory_space<vmem>>) attributes {dimension_semantics = [], scalar_prefetch = 0 : i64, scratch_operands = 0 : i64, tpu.core_type = #tpu.core_type<tc>} {
    %c0 = arith.constant 0 : index
    %c0_0 = arith.constant 0 : index
    %0 = vector.load %arg0[%c0, %c0_0] : memref<16x32xf32, #tpu.memory_space<vmem>>, vector<16x32xf32>
    %c0_1 = arith.constant 0 : index
    %c0_2 = arith.constant 0 : index
    %1 = vector.load %arg6[%c0_1, %c0_2] : memref<8x128xf32, #tpu.memory_space<vmem>>, vector<8x128xf32>
    %2 = vector.extract_strided_slice %1 {offsets = [0, 0], sizes = [1, 96], strides = [1, 1]} : vector<8x128xf32> to vector<1x96xf32>
    %3 = vector.extract_strided_slice %1 {offsets = [1, 0], sizes = [1, 32], strides = [1, 1]} : vector<8x128xf32> to vector<1x32xf32>
    %4 = vector.extract_strided_slice %1 {offsets = [2, 0], sizes = [1, 32], strides = [1, 1]} : vector<8x128xf32> to vector<1x32xf32>
    %5 = vector.extract_strided_slice %1 {offsets = [3, 0], sizes = [1, 32], strides = [1, 1]} : vector<8x128xf32> to vector<1x32xf32>
    %6 = vector.extract_strided_slice %1 {offsets = [4, 0], sizes = [1, 64], strides = [1, 1]} : vector<8x128xf32> to vector<1x64xf32>
    %7 = vector.extract_strided_slice %1 {offsets = [5, 0], sizes = [1, 32], strides = [1, 1]} : vector<8x128xf32> to vector<1x32xf32>
    %8 = vector.extract_strided_slice %1 {offsets = [6, 0], sizes = [1, 32], strides = [1, 1]} : vector<8x128xf32> to vector<1x32xf32>
    %9 = vector.extract_strided_slice %1 {offsets = [7, 0], sizes = [1, 32], strides = [1, 1]} : vector<8x128xf32> to vector<1x32xf32>
    %c0_3 = arith.constant 0 : index
    %c0_4 = arith.constant 0 : index
    %10 = vector.load %arg2[%c0_3, %c0_4] : memref<32x96xf32, #tpu.memory_space<vmem>>, vector<32x96xf32>
    %cst = arith.constant dense<0.000000e+00> : vector<16x96xf32>
    %11 = tpu.matmul %0, %10, %cst {dimension_numbers = #tpu.dot_dimension_numbers<[1], [0], [0], [1], [0, 0, 1, 1], [], []>} : vector<16x32xf32>, vector<32x96xf32>, vector<16x96xf32> -> vector<16x96xf32>
    %12 = vector.broadcast %2 : vector<1x96xf32> to vector<16x96xf32>
    %13 = arith.addf %11, %12 : vector<16x96xf32>
    %14 = vector.extract_strided_slice %13 {offsets = [0, 0], sizes = [16, 32], strides = [1, 1]} : vector<16x96xf32> to vector<16x32xf32>
    %15 = vector.extract_strided_slice %13 {offsets = [0, 32], sizes = [16, 32], strides = [1, 1]} : vector<16x96xf32> to vector<16x32xf32>
    %16 = vector.extract_strided_slice %13 {offsets = [0, 64], sizes = [16, 32], strides = [1, 1]} : vector<16x96xf32> to vector<16x32xf32>
    %17 = vector.extract_strided_slice %14 {offsets = [0, 0], sizes = [16, 16], strides = [1, 1]} : vector<16x32xf32> to vector<16x16xf32>
    %18 = vector.shape_cast %17 : vector<16x16xf32> to vector<2x1x8x16xf32>
    %19 = vector.extract_strided_slice %14 {offsets = [0, 16], sizes = [16, 16], strides = [1, 1]} : vector<16x32xf32> to vector<16x16xf32>
    %20 = vector.shape_cast %19 : vector<16x16xf32> to vector<2x1x8x16xf32>
    %21 = tpu.concatenate %18, %20 in 1 : vector<2x1x8x16xf32>, vector<2x1x8x16xf32> -> vector<2x2x8x16xf32>
    %22 = vector.shape_cast %21 : vector<2x2x8x16xf32> to vector<4x8x16xf32>
    %23 = vector.extract_strided_slice %15 {offsets = [0, 0], sizes = [16, 16], strides = [1, 1]} : vector<16x32xf32> to vector<16x16xf32>
    %24 = vector.shape_cast %23 : vector<16x16xf32> to vector<2x1x8x16xf32>
    %25 = vector.extract_strided_slice %15 {offsets = [0, 16], sizes = [16, 16], strides = [1, 1]} : vector<16x32xf32> to vector<16x16xf32>
    %26 = vector.shape_cast %25 : vector<16x16xf32> to vector<2x1x8x16xf32>
    %27 = tpu.concatenate %24, %26 in 1 : vector<2x1x8x16xf32>, vector<2x1x8x16xf32> -> vector<2x2x8x16xf32>
    %28 = vector.shape_cast %27 : vector<2x2x8x16xf32> to vector<4x8x16xf32>
    %29 = vector.extract_strided_slice %16 {offsets = [0, 0], sizes = [16, 16], strides = [1, 1]} : vector<16x32xf32> to vector<16x16xf32>
    %30 = vector.shape_cast %29 : vector<16x16xf32> to vector<2x1x8x16xf32>
    %31 = vector.extract_strided_slice %16 {offsets = [0, 16], sizes = [16, 16], strides = [1, 1]} : vector<16x32xf32> to vector<16x16xf32>
    %32 = vector.shape_cast %31 : vector<16x16xf32> to vector<2x1x8x16xf32>
    %33 = tpu.concatenate %30, %32 in 1 : vector<2x1x8x16xf32>, vector<2x1x8x16xf32> -> vector<2x2x8x16xf32>
    %34 = vector.shape_cast %33 : vector<2x2x8x16xf32> to vector<4x8x16xf32>
    "tpu.trace_start"() <{level = 10 : i32, message = "gqd,gkd->gqk"}> : () -> ()
    %cst_5 = arith.constant dense<0.000000e+00> : vector<4x8x8xf32>
    %35 = tpu.matmul %22, %28, %cst_5 {dimension_numbers = #tpu.dot_dimension_numbers<[2], [2], [1], [1], [0, 0, 0, 1, 1, 1], [0], [0]>} : vector<4x8x16xf32>, vector<4x8x16xf32>, vector<4x8x8xf32> -> vector<4x8x8xf32>
    "tpu.trace_stop"() : () -> ()
    %cst_6 = arith.constant 2.500000e-01 : f32
    %36 = vector.broadcast %cst_6 : f32 to vector<4x8x8xf32>
    %37 = arith.mulf %35, %36 : vector<4x8x8xf32>
    %c0_7 = arith.constant 0 : index
    %c0_8 = arith.constant 0 : index
    %c0_9 = arith.constant 0 : index
    %38 = vector.load %arg1[%c0_7, %c0_8, %c0_9] : memref<4x1x8xf32, #tpu.memory_space<vmem>>, vector<4x1x8xf32>
    %39 = vector.broadcast %38 : vector<4x1x8xf32> to vector<4x8x8xf32>
    %40 = arith.addf %37, %39 : vector<4x8x8xf32>
    %cst_10 = arith.constant dense<0xFF800000> : vector<4x8xf32>
    %41 = vector.multi_reduction <maximumf>, %40, %cst_10 [2] : vector<4x8x8xf32> to vector<4x8xf32>
    %42 = vector.shape_cast %41 : vector<4x8xf32> to vector<4x8x1xf32>
    %43 = vector.broadcast %42 : vector<4x8x1xf32> to vector<4x8x8xf32>
    %44 = arith.subf %40, %43 : vector<4x8x8xf32>
    %45 = math.exp %44 : vector<4x8x8xf32>
    %cst_11 = arith.constant dense<0.000000e+00> : vector<4x8xf32>
    %46 = vector.multi_reduction <add>, %45, %cst_11 [2] : vector<4x8x8xf32> to vector<4x8xf32>
    %47 = vector.shape_cast %46 : vector<4x8xf32> to vector<4x8x1xf32>
    %48 = tpu.reciprocal %47 {approx = true} : vector<4x8x1xf32> -> vector<4x8x1xf32>
    %49 = vector.broadcast %48 : vector<4x8x1xf32> to vector<4x8x8xf32>
    %50 = arith.mulf %45, %49 : vector<4x8x8xf32>
    "tpu.trace_start"() <{level = 10 : i32, message = "gqk,gkd->gqd"}> : () -> ()
    %cst_12 = arith.constant dense<0.000000e+00> : vector<4x8x16xf32>
    %51 = tpu.matmul %50, %34, %cst_12 {dimension_numbers = #tpu.dot_dimension_numbers<[2], [1], [1], [2], [0, 0, 0, 1, 1, 2], [0], [0]>} : vector<4x8x8xf32>, vector<4x8x16xf32>, vector<4x8x16xf32> -> vector<4x8x16xf32>
    "tpu.trace_stop"() : () -> ()
    %52 = vector.shape_cast %51 : vector<4x8x16xf32> to vector<2x2x8x16xf32>
    %53 = vector.extract_strided_slice %52 {offsets = [0, 0, 0, 0], sizes = [2, 1, 8, 16], strides = [1, 1, 1, 1]} : vector<2x2x8x16xf32> to vector<2x1x8x16xf32>
    %54 = vector.shape_cast %53 : vector<2x1x8x16xf32> to vector<2x8x16xf32>
    %55 = vector.shape_cast %54 : vector<2x8x16xf32> to vector<16x16xf32>
    %56 = vector.extract_strided_slice %52 {offsets = [0, 1, 0, 0], sizes = [2, 1, 8, 16], strides = [1, 1, 1, 1]} : vector<2x2x8x16xf32> to vector<2x1x8x16xf32>
    %57 = vector.shape_cast %56 : vector<2x1x8x16xf32> to vector<2x8x16xf32>
    %58 = vector.shape_cast %57 : vector<2x8x16xf32> to vector<16x16xf32>
    %59 = tpu.concatenate %55, %58 in 1 : vector<16x16xf32>, vector<16x16xf32> -> vector<16x32xf32>
    %c0_13 = arith.constant 0 : index
    %c0_14 = arith.constant 0 : index
    %60 = vector.load %arg3[%c0_13, %c0_14] : memref<32x32xf32, #tpu.memory_space<vmem>>, vector<32x32xf32>
    %cst_15 = arith.constant dense<0.000000e+00> : vector<16x32xf32>
    %61 = tpu.matmul %59, %60, %cst_15 {dimension_numbers = #tpu.dot_dimension_numbers<[1], [0], [0], [1], [0, 0, 1, 1], [], []>} : vector<16x32xf32>, vector<32x32xf32>, vector<16x32xf32> -> vector<16x32xf32>
    %62 = vector.broadcast %3 : vector<1x32xf32> to vector<16x32xf32>
    %63 = arith.addf %61, %62 : vector<16x32xf32>
    %64 = arith.addf %63, %0 : vector<16x32xf32>
    %cst_16 = arith.constant dense<0.000000e+00> : vector<16xf32>
    %65 = vector.multi_reduction <add>, %64, %cst_16 [1] : vector<16x32xf32> to vector<16xf32>
    %66 = vector.shape_cast %65 : vector<16xf32> to vector<16x1xf32>
    %cst_17 = arith.constant 3.200000e+01 : f32
    %67 = vector.broadcast %cst_17 : f32 to vector<16x1xf32>
    %68 = arith.divf %66, %67 : vector<16x1xf32>
    %69 = vector.broadcast %68 : vector<16x1xf32> to vector<16x32xf32>
    %70 = arith.subf %64, %69 : vector<16x32xf32>
    %71 = arith.mulf %70, %70 : vector<16x32xf32>
    %cst_18 = arith.constant dense<0.000000e+00> : vector<16xf32>
    %72 = vector.multi_reduction <add>, %71, %cst_18 [1] : vector<16x32xf32> to vector<16xf32>
    %73 = vector.shape_cast %72 : vector<16xf32> to vector<16x1xf32>
    %cst_19 = arith.constant 3.200000e+01 : f32
    %74 = vector.broadcast %cst_19 : f32 to vector<16x1xf32>
    %75 = arith.divf %73, %74 : vector<16x1xf32>
    %76 = vector.broadcast %68 : vector<16x1xf32> to vector<16x32xf32>
    %77 = arith.subf %64, %76 : vector<16x32xf32>
    %cst_20 = arith.constant 9.99999996E-13 : f32
    %78 = vector.broadcast %cst_20 : f32 to vector<16x1xf32>
    %79 = arith.addf %75, %78 : vector<16x1xf32>
    %80 = math.rsqrt %79 : vector<16x1xf32>
    %81 = vector.broadcast %80 : vector<16x1xf32> to vector<16x32xf32>
    %82 = arith.mulf %77, %81 : vector<16x32xf32>
    %83 = vector.broadcast %4 : vector<1x32xf32> to vector<16x32xf32>
    %84 = arith.mulf %82, %83 : vector<16x32xf32>
    %85 = vector.broadcast %5 : vector<1x32xf32> to vector<16x32xf32>
    %86 = arith.addf %84, %85 : vector<16x32xf32>
    %c0_21 = arith.constant 0 : index
    %c0_22 = arith.constant 0 : index
    %87 = vector.load %arg4[%c0_21, %c0_22] : memref<32x64xf32, #tpu.memory_space<vmem>>, vector<32x64xf32>
    %cst_23 = arith.constant dense<0.000000e+00> : vector<16x64xf32>
    %88 = tpu.matmul %86, %87, %cst_23 {dimension_numbers = #tpu.dot_dimension_numbers<[1], [0], [0], [1], [0, 0, 1, 1], [], []>} : vector<16x32xf32>, vector<32x64xf32>, vector<16x64xf32> -> vector<16x64xf32>
    %89 = vector.broadcast %6 : vector<1x64xf32> to vector<16x64xf32>
    %90 = arith.addf %88, %89 : vector<16x64xf32>
    %cst_24 = arith.constant 5.000000e-01 : f32
    %91 = vector.broadcast %cst_24 : f32 to vector<16x64xf32>
    %92 = arith.mulf %90, %91 : vector<16x64xf32>
    %cst_25 = arith.constant 1.41421354 : f32
    %93 = vector.broadcast %cst_25 : f32 to vector<16x64xf32>
    %94 = arith.divf %90, %93 : vector<16x64xf32>
    %95 = math.erf %94 : vector<16x64xf32>
    %cst_26 = arith.constant 1.000000e+00 : f32
    %96 = vector.broadcast %cst_26 : f32 to vector<16x64xf32>
    %97 = arith.addf %96, %95 : vector<16x64xf32>
    %98 = arith.mulf %92, %97 : vector<16x64xf32>
    %c0_27 = arith.constant 0 : index
    %c0_28 = arith.constant 0 : index
    %99 = vector.load %arg5[%c0_27, %c0_28] : memref<64x32xf32, #tpu.memory_space<vmem>>, vector<64x32xf32>
    %cst_29 = arith.constant dense<0.000000e+00> : vector<16x32xf32>
    %100 = tpu.matmul %98, %99, %cst_29 {dimension_numbers = #tpu.dot_dimension_numbers<[1], [0], [0], [1], [0, 0, 1, 1], [], []>} : vector<16x64xf32>, vector<64x32xf32>, vector<16x32xf32> -> vector<16x32xf32>
    %101 = vector.broadcast %7 : vector<1x32xf32> to vector<16x32xf32>
    %102 = arith.addf %100, %101 : vector<16x32xf32>
    %103 = arith.addf %102, %86 : vector<16x32xf32>
    %cst_30 = arith.constant dense<0.000000e+00> : vector<16xf32>
    %104 = vector.multi_reduction <add>, %103, %cst_30 [1] : vector<16x32xf32> to vector<16xf32>
    %105 = vector.shape_cast %104 : vector<16xf32> to vector<16x1xf32>
    %cst_31 = arith.constant 3.200000e+01 : f32
    %106 = vector.broadcast %cst_31 : f32 to vector<16x1xf32>
    %107 = arith.divf %105, %106 : vector<16x1xf32>
    %108 = vector.broadcast %107 : vector<16x1xf32> to vector<16x32xf32>
    %109 = arith.subf %103, %108 : vector<16x32xf32>
    %110 = arith.mulf %109, %109 : vector<16x32xf32>
    %cst_32 = arith.constant dense<0.000000e+00> : vector<16xf32>
    %111 = vector.multi_reduction <add>, %110, %cst_32 [1] : vector<16x32xf32> to vector<16xf32>
    %112 = vector.shape_cast %111 : vector<16xf32> to vector<16x1xf32>
    %cst_33 = arith.constant 3.200000e+01 : f32
    %113 = vector.broadcast %cst_33 : f32 to vector<16x1xf32>
    %114 = arith.divf %112, %113 : vector<16x1xf32>
    %115 = vector.broadcast %107 : vector<16x1xf32> to vector<16x32xf32>
    %116 = arith.subf %103, %115 : vector<16x32xf32>
    %cst_34 = arith.constant 9.99999996E-13 : f32
    %117 = vector.broadcast %cst_34 : f32 to vector<16x1xf32>
    %118 = arith.addf %114, %117 : vector<16x1xf32>
    %119 = math.rsqrt %118 : vector<16x1xf32>
    %120 = vector.broadcast %119 : vector<16x1xf32> to vector<16x32xf32>
    %121 = arith.mulf %116, %120 : vector<16x32xf32>
    %122 = vector.broadcast %8 : vector<1x32xf32> to vector<16x32xf32>
    %123 = arith.mulf %121, %122 : vector<16x32xf32>
    %124 = vector.broadcast %9 : vector<1x32xf32> to vector<16x32xf32>
    %125 = arith.addf %123, %124 : vector<16x32xf32>
    %c0_35 = arith.constant 0 : index
    %c0_36 = arith.constant 0 : index
    %126 = vector.load %arg7[%c0_35, %c0_36] : memref<16x32xf32, #tpu.memory_space<vmem>>, vector<16x32xf32>
    tpu.vector_store %arg7[%c0_35, %c0_36], %125 {strides = array<i32>} : memref<16x32xf32, #tpu.memory_space<vmem>>, vector<16x32xf32>,
    return
  }
}

</mosaic_0001>

<llo_original>
// kernel: bert_layer.1
$region0: #{bert_layer.1}
  #allocation0 [shape = 'u32[]', space=smem, size = 0x4, offset = 0x4, fixed_abs, tag = 'smem constant byte address 0x4 - core index']
  #allocation1 [shape = 'u32[72,128]{1,0:T(1,128)}', space=vmem, size = 0x9000, scoped, tag = 'internal scratch']
  %s0 = inlined_call_operand.hbm [shape: f32[16,32], index: 0, kind: input, shape index: {}]
  %s1 = inlined_call_operand.vmem [shape: f32[4,1,8], index: 1, kind: input, shape index: {}]
  %s2 = inlined_call_operand.vmem [shape: f32[32,96], index: 2, kind: input, shape index: {}]
  %s3 = inlined_call_operand.vmem [shape: f32[32,32], index: 3, kind: input, shape index: {}]
  %s4 = inlined_call_operand.vmem [shape: f32[32,64], index: 4, kind: input, shape index: {}]
  %s5 = inlined_call_operand.vmem [shape: f32[64,32], index: 5, kind: input, shape index: {}]
  %s6 = inlined_call_operand.vmem [shape: f32[8,128], index: 6, kind: input, shape index: {}]
  %s7 = inlined_call_operand.hbm [shape: f32[16,32], index: 7, kind: output, shape index: {}]
  %s8 = sld [smem:[#allocation0]]
  $region42: #{bert_layer.1} parent=0
    _
  %s10 = ssub.s32 1, %s8
  %s11 = scalar_select 0, %s10, %s8
  $region1: #{bert_layer.1} parent=0
    #allocation2 [shape = 'u8[8192]{0}', space=vmem, size = 0x2000, scoped, tag = 'input window, operand 0, single buffered']
    #allocation3 [shape = 's32[1]{0}', space=sflag, size = 0x4, scoped, tag = 'scoped memory for bert_layer.1']
    #allocation4 [shape = 's32[1]{0}', space=sflag, size = 0x4, scoped, tag = 'scoped memory for bert_layer.1']
    #allocation5 [shape = 'u8[8192]{0}', space=vmem, size = 0x2000, scoped, tag = 'output window, operand 0, single buffered']
    %12 = vsyncpa [#allocation3], 0
    %13 = vsyncpa [#allocation4], 0
    // Predicated region
    $region2: #{bert_layer.1} parent=1 // pred_check
      _
    $region3: #{bert_layer.1} parent=1 // pred_check_branch
      %15 = sbr.rel (0) target = $region5
    $region4: #{bert_layer.1} parent=1 // pred_region
      %17 = vsyncadd [#allocation3], 0
      %s18 = sshll.u32 %s0, 4
      %s19 = int_to_ptr.hbm [resolvable:$true] %s18
      %s20 = sshll.u32 [#allocation2], 4
      %s21 = int_to_ptr.vmem [resolvable:$true] %s20
      %26 = dma.hbm_to_vmem [thread:$0]  %s19, 256, %s21, [#allocation3], 128, 128, 8
    $region5: #{bert_layer.1} parent=1 // pred_fallthru
      _
    // Predicated region
    $region6: #{bert_layer.1} parent=1 // pred_check
      _
    $region7: #{bert_layer.1} parent=1 // pred_check_branch
      %28 = sbr.rel (0) target = $region9
    $region8: #{bert_layer.1} parent=1 // pred_region
      _
    $region9: #{bert_layer.1} parent=1 // pred_fallthru
      _
    // Predicated region
    $region10: #{bert_layer.1} parent=1 // pred_check
      _
    $region11: #{bert_layer.1} parent=1 // pred_check_branch
      %30 = sbr.rel (0) target = $region13
    $region12: #{bert_layer.1} parent=1 // pred_region
      _
    $region13: #{bert_layer.1} parent=1 // pred_fallthru
      _
    // Predicated region
    $region14: #{bert_layer.1} parent=1 // pred_check
      _
    $region15: #{bert_layer.1} parent=1 // pred_check_branch
      %32 = sbr.rel (0) target = $region17
    $region16: #{bert_layer.1} parent=1 // pred_region
      _
    $region17: #{bert_layer.1} parent=1 // pred_fallthru
      _
    // Predicated region
    $region18: #{bert_layer.1} parent=1 // pred_check
      _
    $region19: #{bert_layer.1} parent=1 // pred_check_branch
      %34 = sbr.rel (0) target = $region21
    $region20: #{bert_layer.1} parent=1 // pred_region
      _
    $region21: #{bert_layer.1} parent=1 // pred_fallthru
      _
    // Predicated region
    $region22: #{bert_layer.1} parent=1 // pred_check
      _
    $region23: #{bert_layer.1} parent=1 // pred_check_branch
      %36 = sbr.rel (0) target = $region25
    $region24: #{bert_layer.1} parent=1 // pred_region
      _
    $region25: #{bert_layer.1} parent=1 // pred_fallthru
      _
    // Predicated region
    $region26: #{bert_layer.1} parent=1 // pred_check
      _
    $region27: #{bert_layer.1} parent=1 // pred_check_branch
      %38 = sbr.rel (0) target = $region29
    $region28: #{bert_layer.1} parent=1 // pred_region
      _
    $region29: #{bert_layer.1} parent=1 // pred_fallthru
      _
    // Predicated region
    $region30: #{bert_layer.1} parent=1 // pred_check
      _
    $region31: #{bert_layer.1} parent=1 // pred_check_branch
      %40 = sbr.rel (0) target = $region33
    $region32: #{bert_layer.1} parent=1 // pred_region
      %42 = dma.done [#allocation3], 256
    $region33: #{bert_layer.1} parent=1 // pred_fallthru
      _
    %v43 = vld [vmem:[#allocation2] sm:$0xff]
    %v44 = vld [vmem:[#allocation2 + $0x8] sm:$0xff]
    %v45 = vld [vmem:[%s6] sm:$0xff]
    %v46 = vld [vmem:[%s2] sm:$0xff]
    %v47 = vld [vmem:[%s2 + $0x8] sm:$0xff]
    %v48 = vld [vmem:[%s2 + $0x10] sm:$0xff]
    %v49 = vld [vmem:[%s2 + $0x18] sm:$0xff]
    %v50 = vperm.slane %v45, 0
    %vm51 = vcmask 261120
    %v53 = vsel %vm51, %v43, 0
    %v56 = vsel %vm51, %v44, 0
    %58 = vmatpush.msra.mxu0 0.0
    %59 = vmatpush.msra.mxu0 0.0
    %60 = vmatpush.msra.mxu0 0.0
    %61 = vmatpush.msra.mxu0 0.0
    %62 = vmatpush.msra.mxu0 0.0
    %63 = vmatpush.msra.mxu0 0.0
    %64 = vmatpush.msra.mxu0 0.0
    %65 = vmatpush.msra.mxu0 0.0
    %66 = vmatpush.msra.mxu0 0.0
    %67 = vmatpush.msra.mxu0 0.0
    %68 = vmatpush.msra.mxu0 0.0
    %69 = vmatpush.msra.mxu0 0.0
    %70 = vmatpush.msra.mxu0 %v49
    %71 = vmatpush.msra.mxu0 %v48
    %72 = vmatpush.msra.mxu0 %v47
    %73 = vmatpush.msra.mxu0 %v46
    %74 = vmatmul.f32.gmra.mxu0 %v53
    %v75 = vpop.f32.mrf.mxu0
    %v76 = vadd.f32 %v50, %v75
    %77 = vmatmul.f32.gmra.mxu0 %v56
    %v78 = vpop.f32.mrf.mxu0
    %v79 = vadd.f32 %v50, %v78
    %80 = vdwg.mxu0
    %83 = vrot.lane.b32.xlu0 %v76, 112
    %v84 = vpop.permute.xlu0 %83
    %85 = vrot.lane.b32.xlu0 %v79, 112
    %v86 = vpop.permute.xlu0 %85
    %87 = vrot.lane.b32.xlu0 %v76, 96
    %v88 = vpop.permute.xlu0 %87
    %vm89 = vcmask 130048
    %v90 = vsel %vm89, %v76, 0
    %v92 = vsel %vm89, %v88, 0
    %94 = vmatpush.xpose.msra.mxu0 0.0
    %95 = vmatpush.xpose.msra.mxu0 0.0
    %96 = vmatpush.xpose.msra.mxu0 0.0
    %97 = vmatpush.xpose.msra.mxu0 0.0
    %98 = vmatpush.xpose.msra.mxu0 0.0
    %99 = vmatpush.xpose.msra.mxu0 0.0
    %100 = vmatpush.xpose.msra.mxu0 0.0
    %101 = vmatpush.xpose.msra.mxu0 0.0
    %102 = vmatpush.xpose.msra.mxu0 0.0
    %103 = vmatpush.xpose.msra.mxu0 0.0
    %104 = vmatpush.xpose.msra.mxu0 0.0
    %105 = vmatpush.xpose.msra.mxu0 0.0
    %106 = vmatpush.xpose.msra.mxu0 0.0
    %107 = vmatpush.xpose.msra.mxu0 0.0
    %108 = vmatpush.xpose.msra.mxu0 0.0
    %109 = vmatpush.xpose.msra.mxu0 %v92
    %110 = vmatmul.f32.gmra.mxu0 %v90
    %v111 = vpop.f32.mrf.mxu0
    %v112 = vadd.f32 0.0, %v111
    %113 = vdwg.mxu0
    %114 = vrot.lane.b32.xlu0 %v84, 96
    %v115 = vpop.permute.xlu0 %114
    %v116 = vsel %vm89, %v84, 0
    %v118 = vsel %vm89, %v115, 0
    %120 = vmatpush.xpose.msra.mxu0 0.0
    %121 = vmatpush.xpose.msra.mxu0 0.0
    %122 = vmatpush.xpose.msra.mxu0 0.0
    %123 = vmatpush.xpose.msra.mxu0 0.0
    %124 = vmatpush.xpose.msra.mxu0 0.0
    %125 = vmatpush.xpose.msra.mxu0 0.0
    %126 = vmatpush.xpose.msra.mxu0 0.0
    %127 = vmatpush.xpose.msra.mxu0 0.0
    %128 = vmatpush.xpose.msra.mxu0 0.0
    %129 = vmatpush.xpose.msra.mxu0 0.0
    %130 = vmatpush.xpose.msra.mxu0 0.0
    %131 = vmatpush.xpose.msra.mxu0 0.0
    %132 = vmatpush.xpose.msra.mxu0 0.0
    %133 = vmatpush.xpose.msra.mxu0 0.0
    %134 = vmatpush.xpose.msra.mxu0 0.0
    %135 = vmatpush.xpose.msra.mxu0 %v118
    %136 = vmatmul.f32.gmra.mxu0 %v116
    %v137 = vpop.f32.mrf.mxu0
    %v138 = vadd.f32 0.0, %v137
    %139 = vdwg.mxu0
    %140 = vrot.lane.b32.xlu0 %v79, 96
    %v141 = vpop.permute.xlu0 %140
    %v142 = vsel %vm89, %v79, 0
    %v144 = vsel %vm89, %v141, 0
    %146 = vmatpush.xpose.msra.mxu0 0.0
    %147 = vmatpush.xpose.msra.mxu0 0.0
    %148 = vmatpush.xpose.msra.mxu0 0.0
    %149 = vmatpush.xpose.msra.mxu0 0.0
    %150 = vmatpush.xpose.msra.mxu0 0.0
    %151 = vmatpush.xpose.msra.mxu0 0.0
    %152 = vmatpush.xpose.msra.mxu0 0.0
    %153 = vmatpush.xpose.msra.mxu0 0.0
    %154 = vmatpush.xpose.msra.mxu0 0.0
    %155 = vmatpush.xpose.msra.mxu0 0.0
    %156 = vmatpush.xpose.msra.mxu0 0.0
    %157 = vmatpush.xpose.msra.mxu0 0.0
    %158 = vmatpush.xpose.msra.mxu0 0.0
    %159 = vmatpush.xpose.msra.mxu0 0.0
    %160 = vmatpush.xpose.msra.mxu0 0.0
    %161 = vmatpush.xpose.msra.mxu0 %v144
    %162 = vmatmul.f32.gmra.mxu0 %v142
    %v163 = vpop.f32.mrf.mxu0
    %v164 = vadd.f32 0.0, %v163
    %165 = vdwg.mxu0
    %166 = vrot.lane.b32.xlu0 %v86, 96
    %v167 = vpop.permute.xlu0 %166
    %v168 = vsel %vm89, %v86, 0
    %v170 = vsel %vm89, %v167, 0
    %172 = vmatpush.xpose.msra.mxu0 0.0
    %173 = vmatpush.xpose.msra.mxu0 0.0
    %174 = vmatpush.xpose.msra.mxu0 0.0
    %175 = vmatpush.xpose.msra.mxu0 0.0
    %176 = vmatpush.xpose.msra.mxu0 0.0
    %177 = vmatpush.xpose.msra.mxu0 0.0
    %178 = vmatpush.xpose.msra.mxu0 0.0
    %179 = vmatpush.xpose.msra.mxu0 0.0
    %180 = vmatpush.xpose.msra.mxu0 0.0
    %181 = vmatpush.xpose.msra.mxu0 0.0
    %182 = vmatpush.xpose.msra.mxu0 0.0
    %183 = vmatpush.xpose.msra.mxu0 0.0
    %184 = vmatpush.xpose.msra.mxu0 0.0
    %185 = vmatpush.xpose.msra.mxu0 0.0
    %186 = vmatpush.xpose.msra.mxu0 0.0
    %187 = vmatpush.xpose.msra.mxu0 %v170
    %188 = vmatmul.f32.gmra.mxu0 %v168
    %v189 = vpop.f32.mrf.mxu0
    %v190 = vadd.f32 0.0, %v189
    %191 = vdwg.mxu0
    %v192 = vmul.f32 %v112, 0.25
    %v193 = vmul.f32 %v138, 0.25
    %v194 = vmul.f32 %v164, 0.25
    %v195 = vmul.f32 %v190, 0.25
    %v196 = vld [vmem:[%s1] sm:$0x1]
    %v197 = vld [vmem:[%s1 + $0x1] sm:$0x1]
    %v198 = vld [vmem:[%s1 + $0x2] sm:$0x1]
    %v199 = vld [vmem:[%s1 + $0x3] sm:$0x1]
    %v204 = vperm.slane %v196, 0
    %v205 = vperm.slane %v197, 0
    %v206 = vperm.slane %v198, 0
    %v207 = vperm.slane %v199, 0
    %v212 = vadd.f32 %v192, %v204
    %v213 = vadd.f32 %v193, %v205
    %v214 = vadd.f32 %v194, %v206
    %v215 = vadd.f32 %v195, %v207
    %vm216 = vcmask 64512
    %v217 = vsel %vm216, %v212, -inf
    %218 = vmax.xlane.f32.xlu0 %v217
    %v219 = vpop.xlane.xlu0 %218
    %v220 = vsel %vm216, %v213, -inf
    %221 = vmax.xlane.f32.xlu0 %v220
    %v222 = vpop.xlane.xlu0 %221
    %v223 = vsel %vm216, %v214, -inf
    %224 = vmax.xlane.f32.xlu0 %v223
    %v225 = vpop.xlane.xlu0 %224
    %v226 = vsel %vm216, %v215, -inf
    %227 = vmax.xlane.f32.xlu0 %v226
    %v228 = vpop.xlane.xlu0 %227
    %v229 = vsub.f32 %v212, %v219
    %v230 = vsub.f32 %v213, %v222
    %v231 = vsub.f32 %v214, %v225
    %v232 = vsub.f32 %v215, %v228
    %v233 = vmul.f32 %v229, 1.442695
    %v234 = vpow.pop %v233
    %v235 = vmul.f32 %v230, 1.442695
    %v236 = vpow.pop %v235
    %v237 = vmul.f32 %v231, 1.442695
    %v238 = vpow.pop %v237
    %v239 = vmul.f32 %v232, 1.442695
    %v240 = vpow.pop %v239
    %v241 = vsel %vm216, %v234, 0.0
    %242 = vadd.xlane.f32.xlu0 %v241
    %v243 = vpop.xlane.xlu0 %242
    %v244 = vsel %vm216, %v236, 0.0
    %245 = vadd.xlane.f32.xlu0 %v244
    %v246 = vpop.xlane.xlu0 %245
    %v247 = vsel %vm216, %v238, 0.0
    %248 = vadd.xlane.f32.xlu0 %v247
    %v249 = vpop.xlane.xlu0 %248
    %v250 = vsel %vm216, %v240, 0.0
    %251 = vadd.xlane.f32.xlu0 %v250
    %v252 = vpop.xlane.xlu0 %251
    %v253 = vrcp.pop %v243
    %v254 = vrcp.pop %v246
    %v255 = vrcp.pop %v249
    %v256 = vrcp.pop %v252
    %v257 = vmul.f32 %v234, %v253
    %v258 = vmul.f32 %v236, %v254
    %v259 = vmul.f32 %v238, %v255
    %v260 = vmul.f32 %v240, %v256
    %261 = vrot.lane.b32.xlu0 %v76, 64
    %v262 = vpop.permute.xlu0 %261
    %v265 = vsel %vm216, %v257, 0
    %267 = vmatpush.msra.mxu0 0.0
    %268 = vmatpush.msra.mxu0 0.0
    %269 = vmatpush.msra.mxu0 0.0
    %270 = vmatpush.msra.mxu0 0.0
    %271 = vmatpush.msra.mxu0 0.0
    %272 = vmatpush.msra.mxu0 0.0
    %273 = vmatpush.msra.mxu0 0.0
    %274 = vmatpush.msra.mxu0 0.0
    %275 = vmatpush.msra.mxu0 0.0
    %276 = vmatpush.msra.mxu0 0.0
    %277 = vmatpush.msra.mxu0 0.0
    %278 = vmatpush.msra.mxu0 0.0
    %279 = vmatpush.msra.mxu0 0.0
    %280 = vmatpush.msra.mxu0 0.0
    %281 = vmatpush.msra.mxu0 0.0
    %282 = vmatpush.msra.mxu0 %v262
    %283 = vmatmul.f32.gmra.mxu0 %v265
    %v284 = vpop.f32.mrf.mxu0
    %v285 = vadd.f32 0.0, %v284
    %286 = vdwg.mxu0
    %287 = vrot.lane.b32.xlu0 %v84, 64
    %v288 = vpop.permute.xlu0 %287
    %v291 = vsel %vm216, %v258, 0
    %293 = vmatpush.msra.mxu0 0.0
    %294 = vmatpush.msra.mxu0 0.0
    %295 = vmatpush.msra.mxu0 0.0
    %296 = vmatpush.msra.mxu0 0.0
    %297 = vmatpush.msra.mxu0 0.0
    %298 = vmatpush.msra.mxu0 0.0
    %299 = vmatpush.msra.mxu0 0.0
    %300 = vmatpush.msra.mxu0 0.0
    %301 = vmatpush.msra.mxu0 0.0
    %302 = vmatpush.msra.mxu0 0.0
    %303 = vmatpush.msra.mxu0 0.0
    %304 = vmatpush.msra.mxu0 0.0
    %305 = vmatpush.msra.mxu0 0.0
    %306 = vmatpush.msra.mxu0 0.0
    %307 = vmatpush.msra.mxu0 0.0
    %308 = vmatpush.msra.mxu0 %v288
    %309 = vmatmul.f32.gmra.mxu0 %v291
    %v310 = vpop.f32.mrf.mxu0
    %v311 = vadd.f32 0.0, %v310
    %312 = vdwg.mxu0
    %313 = vrot.lane.b32.xlu0 %v79, 64
    %v314 = vpop.permute.xlu0 %313
    %v317 = vsel %vm216, %v259, 0
    %319 = vmatpush.msra.mxu0 0.0
    %320 = vmatpush.msra.mxu0 0.0
    %321 = vmatpush.msra.mxu0 0.0
    %322 = vmatpush.msra.mxu0 0.0
    %323 = vmatpush.msra.mxu0 0.0
    %324 = vmatpush.msra.mxu0 0.0
    %325 = vmatpush.msra.mxu0 0.0
    %326 = vmatpush.msra.mxu0 0.0
    %327 = vmatpush.msra.mxu0 0.0
    %328 = vmatpush.msra.mxu0 0.0
    %329 = vmatpush.msra.mxu0 0.0
    %330 = vmatpush.msra.mxu0 0.0
    %331 = vmatpush.msra.mxu0 0.0
    %332 = vmatpush.msra.mxu0 0.0
    %333 = vmatpush.msra.mxu0 0.0
    %334 = vmatpush.msra.mxu0 %v314
    %335 = vmatmul.f32.gmra.mxu0 %v317
    %v336 = vpop.f32.mrf.mxu0
    %v337 = vadd.f32 0.0, %v336
    %338 = vdwg.mxu0
    %339 = vrot.lane.b32.xlu0 %v86, 64
    %v340 = vpop.permute.xlu0 %339
    %v343 = vsel %vm216, %v260, 0
    %345 = vmatpush.msra.mxu0 0.0
    %346 = vmatpush.msra.mxu0 0.0
    %347 = vmatpush.msra.mxu0 0.0
    %348 = vmatpush.msra.mxu0 0.0
    %349 = vmatpush.msra.mxu0 0.0
    %350 = vmatpush.msra.mxu0 0.0
    %351 = vmatpush.msra.mxu0 0.0
    %352 = vmatpush.msra.mxu0 0.0
    %353 = vmatpush.msra.mxu0 0.0
    %354 = vmatpush.msra.mxu0 0.0
    %355 = vmatpush.msra.mxu0 0.0
    %356 = vmatpush.msra.mxu0 0.0
    %357 = vmatpush.msra.mxu0 0.0
    %358 = vmatpush.msra.mxu0 0.0
    %359 = vmatpush.msra.mxu0 0.0
    %360 = vmatpush.msra.mxu0 %v340
    %361 = vmatmul.f32.gmra.mxu0 %v343
    %v362 = vpop.f32.mrf.mxu0
    %v363 = vadd.f32 0.0, %v362
    %364 = vdwg.mxu0
    %367 = vrot.lane.b32.xlu0 %v311, 16
    %v368 = vpop.permute.xlu0 %367
    %369 = vrot.lane.b32.xlu0 %v363, 16
    %v370 = vpop.permute.xlu0 %369
    %v373 = vsel %vm89, %v285, %v368
    %v374 = vsel %vm89, %v337, %v370
    %v375 = vld [vmem:[%s3] sm:$0xff]
    %v376 = vld [vmem:[%s3 + $0x8] sm:$0xff]
    %v377 = vld [vmem:[%s3 + $0x10] sm:$0xff]
    %v378 = vld [vmem:[%s3 + $0x18] sm:$0xff]
    %v379 = vperm.slane %v45, 1
    %v381 = vsel %vm51, %v373, 0
    %v384 = vsel %vm51, %v374, 0
    %386 = vmatpush.msra.mxu0 0.0
    %387 = vmatpush.msra.mxu0 0.0
    %388 = vmatpush.msra.mxu0 0.0
    %389 = vmatpush.msra.mxu0 0.0
    %390 = vmatpush.msra.mxu0 0.0
    %391 = vmatpush.msra.mxu0 0.0
    %392 = vmatpush.msra.mxu0 0.0
    %393 = vmatpush.msra.mxu0 0.0
    %394 = vmatpush.msra.mxu0 0.0
    %395 = vmatpush.msra.mxu0 0.0
    %396 = vmatpush.msra.mxu0 0.0
    %397 = vmatpush.msra.mxu0 0.0
    %398 = vmatpush.msra.mxu0 %v378
    %399 = vmatpush.msra.mxu0 %v377
    %400 = vmatpush.msra.mxu0 %v376
    %401 = vmatpush.msra.mxu0 %v375
    %402 = vmatmul.f32.gmra.mxu0 %v381
    %v403 = vpop.f32.mrf.mxu0
    %v404 = vadd.f32 %v379, %v403
    %405 = vmatmul.f32.gmra.mxu0 %v384
    %v406 = vpop.f32.mrf.mxu0
    %v407 = vadd.f32 %v379, %v406
    %408 = vdwg.mxu0
    %v409 = vadd.f32 %v404, %v43
    %v410 = vadd.f32 %v407, %v44
    %v411 = vsel %vm51, %v409, 0.0
    %412 = vadd.xlane.f32.xlu0 %v411
    %v413 = vpop.xlane.xlu0 %412
    %v414 = vsel %vm51, %v410, 0.0
    %415 = vadd.xlane.f32.xlu0 %v414
    %v416 = vpop.xlane.xlu0 %415
    %v417 = vrcp.pop 32.0
    %v418 = vmul.f32 32.0, %v417
    %v419 = vsub.f32 1.0, %v418
    %v420 = vmul.f32 %v417, %v419
    %v421 = vadd.f32 %v417, %v420
    %vm422 = vweird.f32 %v417
    %v423 = vsel %vm422, %v417, %v421
    %v424 = vmul.f32 %v413, %v423
    %v425 = vmul.f32 %v416, %v423
    %v426 = vsub.f32 %v409, %v424
    %v427 = vsub.f32 %v410, %v425
    %v428 = vmul.f32 %v426, %v426
    %v429 = vmul.f32 %v427, %v427
    %v430 = vsel %vm51, %v428, 0.0
    %431 = vadd.xlane.f32.xlu0 %v430
    %v432 = vpop.xlane.xlu0 %431
    %v433 = vsel %vm51, %v429, 0.0
    %434 = vadd.xlane.f32.xlu0 %v433
    %v435 = vpop.xlane.xlu0 %434
    %v436 = vmul.f32 %v432, %v423
    %v437 = vmul.f32 %v435, %v423
    %v438 = vadd.f32 %v436, 1e-12
    %v439 = vadd.f32 %v437, 1e-12
    %v440 = vrsqrt.pop %v438
    %v441 = vmul.f32 %v440, %v438
    %v442 = vmul.f32 %v441, %v440
    %v443 = vmul.f32 0.5, %v442
    %v444 = vsub.f32 1.5, %v443
    %v445 = vmul.f32 %v440, %v444
    %vm446 = vweird.f32 %v438
    %vm447 = vweird.f32 %v440
    %vm448 = vmor %vm446, %vm447
    %v449 = vsel %vm448, %v440, %v445
    %v450 = vrsqrt.pop %v439
    %v451 = vmul.f32 %v450, %v439
    %v452 = vmul.f32 %v451, %v450
    %v453 = vmul.f32 0.5, %v452
    %v454 = vsub.f32 1.5, %v453
    %v455 = vmul.f32 %v450, %v454
    %vm456 = vweird.f32 %v439
    %vm457 = vweird.f32 %v450
    %vm458 = vmor %vm456, %vm457
    %v459 = vsel %vm458, %v450, %v455
    %v460 = vmul.f32 %v426, %v449
    %v461 = vmul.f32 %v427, %v459
    %v462 = vperm.slane %v45, 2
    %v463 = vmul.f32 %v460, %v462
    %v464 = vmul.f32 %v461, %v462
    %v465 = vperm.slane %v45, 3
    %v466 = vadd.f32 %v463, %v465
    %v467 = vadd.f32 %v464, %v465
    %v468 = vld [vmem:[%s4] sm:$0xff]
    %v469 = vld [vmem:[%s4 + $0x8] sm:$0xff]
    %v470 = vld [vmem:[%s4 + $0x10] sm:$0xff]
    %v471 = vld [vmem:[%s4 + $0x18] sm:$0xff]
    %v472 = vperm.slane %v45, 4
    %v474 = vsel %vm51, %v466, 0
    %v477 = vsel %vm51, %v467, 0
    %479 = vmatpush.msra.mxu0 0.0
    %480 = vmatpush.msra.mxu0 0.0
    %481 = vmatpush.msra.mxu0 0.0
    %482 = vmatpush.msra.mxu0 0.0
    %483 = vmatpush.msra.mxu0 0.0
    %484 = vmatpush.msra.mxu0 0.0
    %485 = vmatpush.msra.mxu0 0.0
    %486 = vmatpush.msra.mxu0 0.0
    %487 = vmatpush.msra.mxu0 0.0
    %488 = vmatpush.msra.mxu0 0.0
    %489 = vmatpush.msra.mxu0 0.0
    %490 = vmatpush.msra.mxu0 0.0
    %491 = vmatpush.msra.mxu0 %v471
    %492 = vmatpush.msra.mxu0 %v470
    %493 = vmatpush.msra.mxu0 %v469
    %494 = vmatpush.msra.mxu0 %v468
    %495 = vmatmul.f32.gmra.mxu0 %v474
    %v496 = vpop.f32.mrf.mxu0
    %v497 = vadd.f32 %v472, %v496
    %498 = vmatmul.f32.gmra.mxu0 %v477
    %v499 = vpop.f32.mrf.mxu0
    %v500 = vadd.f32 %v472, %v499
    %501 = vdwg.mxu0
    %v502 = vmul.f32 %v497, 0.5
    %v503 = vmul.f32 %v500, 0.5
    %v504 = vrcp.pop 1.4142135
    %v505 = vmul.f32 1.4142135, %v504
    %v506 = vsub.f32 1.0, %v505
    %v507 = vmul.f32 %v504, %v506
    %v508 = vadd.f32 %v504, %v507
    %vm509 = vweird.f32 %v504
    %v510 = vsel %vm509, %v504, %v508
    %v511 = vmul.f32 %v497, %v510
    %v512 = vmul.f32 %v500, %v510
    %v513 = vmul.f32 %v511, %v511
    %v514 = vmin.f32 16.0, %v513
    %v515 = vmul.f32 %v514, 2.1237322e-06
    %v516 = vadd.f32 %v515, 0.00028619796
    %v517 = vmul.f32 %v514, %v516
    %v518 = vadd.f32 %v517, 0.0036580483
    %v519 = vmul.f32 %v514, %v518
    %v520 = vadd.f32 %v519, 0.05243302
    %v521 = vmul.f32 %v514, %v520
    %v522 = vadd.f32 %v521, 0.18741608
    %v523 = vmul.f32 %v514, %v522
    %v524 = vadd.f32 %v523, 1.1283791
    %v525 = vmul.f32 %v511, %v524
    %v526 = vmul.f32 %v514, 3.8918573e-05
    %v527 = vadd.f32 %v526, 0.001143296
    %v528 = vmul.f32 %v514, %v527
    %v529 = vadd.f32 %v528, 0.014752088
    %v530 = vmul.f32 %v514, %v529
    %v531 = vadd.f32 %v530, 0.112945676
    %v532 = vmul.f32 %v514, %v531
    %v533 = vadd.f32 %v532, 0.4994258
    %v534 = vmul.f32 %v514, %v533
    %v535 = vadd.f32 %v534, 1.0
    %v536 = vrcp.pop %v535
    %v537 = vmul.f32 %v535, %v536
    %v538 = vsub.f32 1.0, %v537
    %v539 = vmul.f32 %v536, %v538
    %v540 = vadd.f32 %v536, %v539
    %vm541 = vweird.f32 %v535
    %vm542 = vweird.f32 %v536
    %vm543 = vmor %vm541, %vm542
    %v544 = vsel %vm543, %v536, %v540
    %v545 = vand.u32 2147483647, %v535
    %vm546 = vcmp.eq.f32.partialorder %v545, 8.507059e+37
    %v547 = vand.u32 %v535, 2147483648
    %v548 = vor.u32 1.1754944e-38, %v547
    %v549 = vsel %vm546, %v548, %v544
    %v550 = vmul.f32 %v525, %v549
    %v551 = vmin.f32 %v550, 1.0
    %v552 = vmax.f32 %v551, -1.0
    %v553 = vmul.f32 %v512, %v512
    %v554 = vmin.f32 16.0, %v553
    %v555 = vmul.f32 %v554, 2.1237322e-06
    %v556 = vadd.f32 %v555, 0.00028619796
    %v557 = vmul.f32 %v554, %v556
    %v558 = vadd.f32 %v557, 0.0036580483
    %v559 = vmul.f32 %v554, %v558
    %v560 = vadd.f32 %v559, 0.05243302
    %v561 = vmul.f32 %v554, %v560
    %v562 = vadd.f32 %v561, 0.18741608
    %v563 = vmul.f32 %v554, %v562
    %v564 = vadd.f32 %v563, 1.1283791
    %v565 = vmul.f32 %v512, %v564
    %v566 = vmul.f32 %v554, 3.8918573e-05
    %v567 = vadd.f32 %v566, 0.001143296
    %v568 = vmul.f32 %v554, %v567
    %v569 = vadd.f32 %v568, 0.014752088
    %v570 = vmul.f32 %v554, %v569
    %v571 = vadd.f32 %v570, 0.112945676
    %v572 = vmul.f32 %v554, %v571
    %v573 = vadd.f32 %v572, 0.4994258
    %v574 = vmul.f32 %v554, %v573
    %v575 = vadd.f32 %v574, 1.0
    %v576 = vrcp.pop %v575
    %v577 = vmul.f32 %v575, %v576
    %v578 = vsub.f32 1.0, %v577
    %v579 = vmul.f32 %v576, %v578
    %v580 = vadd.f32 %v576, %v579
    %vm581 = vweird.f32 %v575
    %vm582 = vweird.f32 %v576
    %vm583 = vmor %vm581, %vm582
    %v584 = vsel %vm583, %v576, %v580
    %v585 = vand.u32 2147483647, %v575
    %vm586 = vcmp.eq.f32.partialorder %v585, 8.507059e+37
    %v587 = vand.u32 %v575, 2147483648
    %v588 = vor.u32 1.1754944e-38, %v587
    %v589 = vsel %vm586, %v588, %v584
    %v590 = vmul.f32 %v565, %v589
    %v591 = vmin.f32 %v590, 1.0
    %v592 = vmax.f32 %v591, -1.0
    %v593 = vadd.f32 %v552, 1.0
    %v594 = vadd.f32 %v592, 1.0
    %v595 = vmul.f32 %v502, %v593
    %v596 = vmul.f32 %v503, %v594
    %v597 = vld [vmem:[%s5] sm:$0xff]
    %v598 = vld [vmem:[%s5 + $0x8] sm:$0xff]
    %v599 = vld [vmem:[%s5 + $0x10] sm:$0xff]
    %v600 = vld [vmem:[%s5 + $0x18] sm:$0xff]
    %v601 = vld [vmem:[%s5 + $0x20] sm:$0xff]
    %v602 = vld [vmem:[%s5 + $0x28] sm:$0xff]
    %v603 = vld [vmem:[%s5 + $0x30] sm:$0xff]
    %v604 = vld [vmem:[%s5 + $0x38] sm:$0xff]
    %v605 = vperm.slane %v45, 5
    %vm606 = vcmask 523264
    %v608 = vsel %vm606, %v595, 0
    %v611 = vsel %vm606, %v596, 0
    %613 = vmatpush.msra.mxu0 0.0
    %614 = vmatpush.msra.mxu0 0.0
    %615 = vmatpush.msra.mxu0 0.0
    %616 = vmatpush.msra.mxu0 0.0
    %617 = vmatpush.msra.mxu0 0.0
    %618 = vmatpush.msra.mxu0 0.0
    %619 = vmatpush.msra.mxu0 0.0
    %620 = vmatpush.msra.mxu0 0.0
    %621 = vmatpush.msra.mxu0 %v604
    %622 = vmatpush.msra.mxu0 %v603
    %623 = vmatpush.msra.mxu0 %v602
    %624 = vmatpush.msra.mxu0 %v601
    %625 = vmatpush.msra.mxu0 %v600
    %626 = vmatpush.msra.mxu0 %v599
    %627 = vmatpush.msra.mxu0 %v598
    %628 = vmatpush.msra.mxu0 %v597
    %629 = vmatmul.f32.gmra.mxu0 %v608
    %v630 = vpop.f32.mrf.mxu0
    %v631 = vadd.f32 %v605, %v630
    %632 = vmatmul.f32.gmra.mxu0 %v611
    %v633 = vpop.f32.mrf.mxu0
    %v634 = vadd.f32 %v605, %v633
    %635 = vdwg.mxu0
    %v636 = vadd.f32 %v631, %v466
    %v637 = vadd.f32 %v634, %v467
    %v638 = vsel %vm51, %v636, 0.0
    %639 = vadd.xlane.f32.xlu0 %v638
    %v640 = vpop.xlane.xlu0 %639
    %v641 = vsel %vm51, %v637, 0.0
    %642 = vadd.xlane.f32.xlu0 %v641
    %v643 = vpop.xlane.xlu0 %642
    %v644 = vmul.f32 %v640, %v423
    %v645 = vmul.f32 %v643, %v423
    %v646 = vsub.f32 %v636, %v644
    %v647 = vsub.f32 %v637, %v645
    %v648 = vmul.f32 %v646, %v646
    %v649 = vmul.f32 %v647, %v647
    %v650 = vsel %vm51, %v648, 0.0
    %651 = vadd.xlane.f32.xlu0 %v650
    %v652 = vpop.xlane.xlu0 %651
    %v653 = vsel %vm51, %v649, 0.0
    %654 = vadd.xlane.f32.xlu0 %v653
    %v655 = vpop.xlane.xlu0 %654
    %v656 = vmul.f32 %v652, %v423
    %v657 = vmul.f32 %v655, %v423
    %v658 = vadd.f32 %v656, 1e-12
    %v659 = vadd.f32 %v657, 1e-12
    %v660 = vrsqrt.pop %v658
    %v661 = vmul.f32 %v660, %v658
    %v662 = vmul.f32 %v661, %v660
    %v663 = vmul.f32 0.5, %v662
    %v664 = vsub.f32 1.5, %v663
    %v665 = vmul.f32 %v660, %v664
    %vm666 = vweird.f32 %v658
    %vm667 = vweird.f32 %v660
    %vm668 = vmor %vm666, %vm667
    %v669 = vsel %vm668, %v660, %v665
    %v670 = vrsqrt.pop %v659
    %v671 = vmul.f32 %v670, %v659
    %v672 = vmul.f32 %v671, %v670
    %v673 = vmul.f32 0.5, %v672
    %v674 = vsub.f32 1.5, %v673
    %v675 = vmul.f32 %v670, %v674
    %vm676 = vweird.f32 %v659
    %vm677 = vweird.f32 %v670
    %vm678 = vmor %vm676, %vm677
    %v679 = vsel %vm678, %v670, %v675
    %v680 = vmul.f32 %v646, %v669
    %v681 = vmul.f32 %v647, %v679
    %v682 = vperm.slane %v45, 6
    %v683 = vmul.f32 %v680, %v682
    %v684 = vmul.f32 %v681, %v682
    %v685 = vperm.slane %v45, 7
    %v686 = vadd.f32 %v683, %v685
    %v687 = vadd.f32 %v684, %v685
    %688 = vst.msk [vmem:[#allocation5] sm:$0xff] %vm51, %v686
    %689 = vst.msk [vmem:[#allocation5 + $0x8] sm:$0xff] %vm51, %v687
    // Predicated region
    $region34: #{bert_layer.1} parent=1 // pred_check
      _
    $region35: #{bert_layer.1} parent=1 // pred_check_branch
      %691 = sbr.rel (0) target = $region37
    $region36: #{bert_layer.1} parent=1 // pred_region
      %693 = vsyncadd [#allocation4], 0
      %s694 = sshll.u32 [#allocation5], 4
      %s695 = int_to_ptr.vmem [resolvable:$true] %s694
      %s696 = sshll.u32 %s7, 4
      %s697 = int_to_ptr.hbm [resolvable:$true] %s696
      %702 = dma.vmem_to_hbm [thread:$0]  %s695, 256, %s697, [#allocation4], 128, 128, 8
    $region37: #{bert_layer.1} parent=1 // pred_fallthru
      _
    // Predicated region
    $region38: #{bert_layer.1} parent=1 // pred_check
      _
    $region39: #{bert_layer.1} parent=1 // pred_check_branch
      %704 = sbr.rel (0) target = $region41
    $region40: #{bert_layer.1} parent=1 // pred_region
      %706 = dma.done [#allocation4], 256
    $region41: #{bert_layer.1} parent=1 // pred_fallthru
      _
    %707 = vsyncpa [#allocation3], 1
    %708 = vsyncpa [#allocation4], 1

</llo_original>
